<compile_context>
chip_gen: v7x
topology: tpu7x:2x2x1
jax: 0.10.0
libtpu: 0.0.40
codegen_flags: <defaults>
</compile_context>

<pallas_src>
import jax
import jax.numpy as jnp
from jax import lax
from jax.experimental import pallas as pl
from jax.experimental.pallas import tpu as pltpu


def _additive_attention_kernel(q_ref, k_ref, v_ref, wqt_ref, wkt_ref, bias_ref,
                               sw_ref, ctx_ref, attn_ref):
    """One grid step = TB batch elements, fully fused.

    q_ref   : (TB*Lq, H) flattened query rows (Lq == L, or Lq == 1 decoder case)
    k_ref   : (TB*L, H)  flattened key rows
    v_ref   : (TB, L, H) value
    wqt_ref : (H, H)     query_proj weight, transposed (y = x @ W^T)
    wkt_ref : (H, H)     key_proj weight, transposed
    bias_ref: (1, H)     additive bias parameter
    sw_ref  : (1, H)     score_proj weight (row)
    ctx_ref : (TB, H)    context output (batch-dense store)
    attn_ref: (TB, L, 1) attention output (wrapper reshapes to (B, L))
    """
    f32 = jnp.float32
    tb, seq, hid = v_ref.shape

    # Projections as plain 2-D MXU matmuls with M = TB*L (resp. TB) rows.
    k_energy = jnp.dot(k_ref[...].astype(f32), wkt_ref[...].astype(f32),
                       preferred_element_type=f32)                 # (TB*L, H)
    q_energy = jnp.dot(q_ref[...].astype(f32), wqt_ref[...].astype(f32),
                       preferred_element_type=f32)                 # (TB*L, H) or (TB, H)

    # Re-view as (TB, L, H).  With L a multiple of 8 this reshape is a layout
    # no-op (pure sublane regrouping).
    if q_energy.shape[0] == k_energy.shape[0]:                     # q_len == L
        energy = (k_energy + q_energy).reshape(tb, seq, hid)
    else:                                                          # q_len == 1
        energy = (k_energy.reshape(tb, seq, hid)
                  + q_energy.reshape(tb, 1, hid))                  # broadcast over L
    energy = jnp.tanh(energy + bias_ref[...].astype(f32))          # (TB, L, H)

    # score_proj (H -> 1) as multiply + lane-axis reduction (no 1-lane MXU
    # output, no transpose).  keepdims keeps L on the sublane axis so the rest
    # of the kernel needs no lane<->sublane relayouts.
    # NOTE: score_proj's bias is intentionally omitted — softmax is shift
    # invariant, so it has zero effect on attn and context.
    score = jnp.sum(energy * sw_ref[...].astype(f32),
                    axis=-1, keepdims=True)                        # (TB, L, 1)

    # Numerically stable softmax over the key axis (axis=1).
    m = jnp.max(score, axis=1, keepdims=True)                      # (TB, 1, 1)
    e = jnp.exp(score - m)                                         # (TB, L, 1)
    denom = jnp.sum(e, axis=1, keepdims=True)                      # (TB, 1, 1)
    attn = e * pl.reciprocal(denom, approx=True)                   # (TB, L, 1)

    # context[b] = sum_l attn[b, l] * value[b, l, :]; H stays lane-dense.
    ctx = jnp.sum(attn * v_ref[...].astype(f32), axis=1)           # (TB, H)

    ctx_ref[...] = ctx.astype(ctx_ref.dtype)
    attn_ref[...] = attn.astype(attn_ref.dtype)


def _choose_tb(batch, seq_len, target_rows=256):
    """Per-step batch block TB.

    Aim for TB*L ~ 256 MXU rows (v6e/v7x; also fine on v5e) while amortizing the
    per-grid-step overhead.  TB must divide B, and be a multiple of 8 (or the
    full batch) so 2-D (TB, .) blocks satisfy the (8, 128) sublane rule.
    """
    target = max(1, target_rows // max(seq_len, 1))
    if batch <= target:
        return batch
    for tb in range(min(target, batch), 0, -1):
        if batch % tb == 0 and tb % 8 == 0:
            return tb
    return batch


def additive_attention(query, key, value, params):
    """Fused AdditiveAttention forward.

    Returns (context (B, 1, H), attn (B, L)), matching the PyTorch module.
    query may have q_len == v_len or q_len == 1 (decoder step).
    """
    wq, wk = params["wq"], params["wk"]          # (H, H) nn.Linear weights
    bias = params["bias"]                        # (H,)
    sw = params["score_w"]                       # (1, H)
    # params["score_b"] is deliberately unused: softmax(score + c) == softmax(score).

    B, L, H = key.shape
    Bq, Lq, Hq = query.shape
    if Bq != B or Hq != H or Lq not in (1, L):
        raise ValueError(
            f"query shape {query.shape} incompatible with key shape {key.shape}")
    out_dtype = query.dtype

    TB = _choose_tb(B, L)
    grid = (B // TB,)

    # Wrapper-side plumbing: metadata-only reshapes + one small weight transpose.
    # No concatenation / broadcast of activations through HBM.
    key_flat = key.reshape(B * L, H)
    query_flat = query.reshape(B * Lq, H)
    wqt = wq.T
    wkt = wk.T
    bias2 = bias.reshape(1, H)
    sw2 = sw.reshape(1, H)

    ctx, attn = pl.pallas_call(
        _additive_attention_kernel,
        grid=grid,
        in_specs=[
            pl.BlockSpec((TB * Lq, H), lambda b: (b, 0)),      # query rows
            pl.BlockSpec((TB * L, H), lambda b: (b, 0)),       # key rows
            pl.BlockSpec((TB, L, H), lambda b: (b, 0, 0)),     # value
            pl.BlockSpec((H, H), lambda b: (0, 0)),            # Wq^T (resident)
            pl.BlockSpec((H, H), lambda b: (0, 0)),            # Wk^T (resident)
            pl.BlockSpec((1, H), lambda b: (0, 0)),            # additive bias
            pl.BlockSpec((1, H), lambda b: (0, 0)),            # score_proj weight
        ],
        out_specs=(
            pl.BlockSpec((TB, H), lambda b: (b, 0)),           # context (batch-dense)
            pl.BlockSpec((TB, L, 1), lambda b: (b, 0, 0)),     # attn
        ),
        out_shape=(
            jax.ShapeDtypeStruct((B, H), out_dtype),
            jax.ShapeDtypeStruct((B, L, 1), out_dtype),
        ),
        compiler_params=pltpu.CompilerParams(
            dimension_semantics=("parallel",)),                # batch steps across TCs
    )(query_flat, key_flat, value, wqt, wkt, bias2, sw2)

    # Metadata-only reshapes (no copies): (B, H)->(B,1,H), (B, L, 1)->(B, L).
    return ctx.reshape(B, 1, H), attn.reshape(B, L)


def _reference(query, key, value, params):
    """Pure-JAX reference matching the PyTorch module (includes score bias)."""
    hi = lax.Precision.HIGHEST
    proj = (jnp.einsum("blh,oh->blo", key, params["wk"], precision=hi)
            + jnp.einsum("blh,oh->blo", query, params["wq"], precision=hi)
            + params["bias"])
    score = jnp.einsum("blh,oh->blo", jnp.tanh(proj), params["score_w"],
                       precision=hi)[..., 0] + params["score_b"]
    attn = jax.nn.softmax(score, axis=-1)
    context = jnp.einsum("bl,blh->bh", attn, value, precision=hi)[:, None, :]
    return context, attn


def init_params(key, hidden_dim):
    """Deterministic synthetic parameters with nn.Linear / module init shapes."""
    bound = float(hidden_dim) ** -0.5
    k1, k2, k3, k4, k5 = jax.random.split(key, 5)
    return {
        "wq": jax.random.uniform(k1, (hidden_dim, hidden_dim), jnp.float32, -bound, bound),
        "wk": jax.random.uniform(k2, (hidden_dim, hidden_dim), jnp.float32, -bound, bound),
        "bias": jax.random.uniform(k3, (hidden_dim,), jnp.float32, -0.1, 0.1),
        "score_w": jax.random.uniform(k4, (1, hidden_dim), jnp.float32, -bound, bound),
        "score_b": jax.random.uniform(k5, (1,), jnp.float32, -bound, bound),
    }


if __name__ == "__main__":
    root = jax.random.PRNGKey(0)
    kq, kk, kv, kp, kextra = jax.random.split(root, 5)

    fwd = jax.jit(additive_attention)

    # Case 1: q_len == v_len at the original small demo shape (B=2, L=8, H=32).
    B, L, H = 2, 8, 32
    query = jax.random.normal(kq, (B, L, H), jnp.float32)
    key = jax.random.normal(kk, (B, L, H), jnp.float32)
    value = jax.random.normal(kv, (B, L, H), jnp.float32)
    params = init_params(kp, H)

    context, attn = fwd(query, key, value, params)
    jax.block_until_ready((context, attn))

    ctx_ref, attn_ref = _reference(query, key, value, params)
    assert context.shape == (B, 1, H), context.shape
    assert attn.shape == (B, L), attn.shape
    assert jnp.isfinite(context).all() and jnp.isfinite(attn).all()
    assert jnp.allclose(context, ctx_ref, atol=5e-3, rtol=5e-3)
    assert jnp.allclose(attn, attn_ref, atol=5e-3, rtol=5e-3)

    # Case 2: decoder-style q_len == 1 with a bigger batch, exercising the
    # batch-blocked grid (B=64, TB=32 -> 2 grid steps; both TCs busy on v7x).
    B2, L2 = 64, 8
    kq2, kk2, kv2 = jax.random.split(kextra, 3)
    query2 = jax.random.normal(kq2, (B2, 1, H), jnp.float32)
    key2 = jax.random.normal(kk2, (B2, L2, H), jnp.float32)
    value2 = jax.random.normal(kv2, (B2, L2, H), jnp.float32)

    context2, attn2 = fwd(query2, key2, value2, params)
    jax.block_until_ready((context2, attn2))

    ctx_ref2, attn_ref2 = _reference(query2, key2, value2, params)
    assert context2.shape == (B2, 1, H) and attn2.shape == (B2, L2)
    assert jnp.isfinite(context2).all() and jnp.isfinite(attn2).all()
    assert jnp.allclose(context2, ctx_ref2, atol=5e-3, rtol=5e-3)
    assert jnp.allclose(attn2, attn_ref2, atol=5e-3, rtol=5e-3)

    print("KERNEL_OK")
</pallas_src>

<mosaic_0001>
module attributes {stable_mosaic.version = 11 : i64} {
  func.func @_additive_attention_kernel(%arg0: i32, %arg1: memref<16x32xf32, #tpu.memory_space<vmem>>, %arg2: memref<16x32xf32, #tpu.memory_space<vmem>>, %arg3: memref<2x8x32xf32, #tpu.memory_space<vmem>>, %arg4: memref<32x32xf32, #tpu.memory_space<vmem>>, %arg5: memref<32x32xf32, #tpu.memory_space<vmem>>, %arg6: memref<1x32xf32, #tpu.memory_space<vmem>>, %arg7: memref<1x32xf32, #tpu.memory_space<vmem>>, %arg8: memref<2x32xf32, #tpu.memory_space<vmem>>, %arg9: memref<2x8x1xf32, #tpu.memory_space<vmem>>) attributes {dimension_semantics = [#tpu.dimension_semantics<parallel>], iteration_bounds = array<i64: 1>, scalar_prefetch = 0 : i64, scratch_operands = 0 : i64, tpu.core_type = #tpu.core_type<tc>, window_params = [{transform_indices = @transform_0, window_bounds = array<i64: 16, 32>}, {transform_indices = @transform_1, window_bounds = array<i64: 16, 32>}, {transform_indices = @transform_2, window_bounds = array<i64: 2, 8, 32>}, {pipeline_mode = #tpu.pipeline_mode<synchronous>, transform_indices = @transform_3, window_bounds = array<i64: 32, 32>}, {pipeline_mode = #tpu.pipeline_mode<synchronous>, transform_indices = @transform_4, window_bounds = array<i64: 32, 32>}, {pipeline_mode = #tpu.pipeline_mode<synchronous>, transform_indices = @transform_5, window_bounds = array<i64: 1, 32>}, {pipeline_mode = #tpu.pipeline_mode<synchronous>, transform_indices = @transform_6, window_bounds = array<i64: 1, 32>}, {transform_indices = @transform_7, window_bounds = array<i64: 2, 32>}, {transform_indices = @transform_8, window_bounds = array<i64: 2, 8, 1>}]} {
    %c0 = arith.constant 0 : index
    %c0_0 = arith.constant 0 : index
    %0 = vector.load %arg2[%c0, %c0_0] : memref<16x32xf32, #tpu.memory_space<vmem>>, vector<16x32xf32>
    %c0_1 = arith.constant 0 : index
    %c0_2 = arith.constant 0 : index
    %1 = vector.load %arg5[%c0_1, %c0_2] : memref<32x32xf32, #tpu.memory_space<vmem>>, vector<32x32xf32>
    %cst = arith.constant dense<0.000000e+00> : vector<16x32xf32>
    %2 = tpu.matmul %0, %1, %cst {dimension_numbers = #tpu.dot_dimension_numbers<[1], [0], [0], [1], [0, 0, 1, 1], [], []>} : vector<16x32xf32>, vector<32x32xf32>, vector<16x32xf32> -> vector<16x32xf32>
    %c0_3 = arith.constant 0 : index
    %c0_4 = arith.constant 0 : index
    %3 = vector.load %arg1[%c0_3, %c0_4] : memref<16x32xf32, #tpu.memory_space<vmem>>, vector<16x32xf32>
    %c0_5 = arith.constant 0 : index
    %c0_6 = arith.constant 0 : index
    %4 = vector.load %arg4[%c0_5, %c0_6] : memref<32x32xf32, #tpu.memory_space<vmem>>, vector<32x32xf32>
    %cst_7 = arith.constant dense<0.000000e+00> : vector<16x32xf32>
    %5 = tpu.matmul %3, %4, %cst_7 {dimension_numbers = #tpu.dot_dimension_numbers<[1], [0], [0], [1], [0, 0, 1, 1], [], []>} : vector<16x32xf32>, vector<32x32xf32>, vector<16x32xf32> -> vector<16x32xf32>
    %6 = arith.addf %2, %5 : vector<16x32xf32>
    %7 = vector.shape_cast %6 : vector<16x32xf32> to vector<2x8x32xf32>
    %c0_8 = arith.constant 0 : index
    %c0_9 = arith.constant 0 : index
    %8 = vector.load %arg6[%c0_8, %c0_9] : memref<1x32xf32, #tpu.memory_space<vmem>>, vector<1x32xf32>
    %9 = vector.shape_cast %8 : vector<1x32xf32> to vector<1x1x32xf32>
    %10 = vector.broadcast %9 : vector<1x1x32xf32> to vector<2x8x32xf32>
    %11 = arith.addf %7, %10 : vector<2x8x32xf32>
    %12 = math.tanh %11 : vector<2x8x32xf32>
    %c0_10 = arith.constant 0 : index
    %c0_11 = arith.constant 0 : index
    %13 = vector.load %arg7[%c0_10, %c0_11] : memref<1x32xf32, #tpu.memory_space<vmem>>, vector<1x32xf32>
    %14 = vector.shape_cast %13 : vector<1x32xf32> to vector<1x1x32xf32>
    %15 = vector.broadcast %14 : vector<1x1x32xf32> to vector<2x8x32xf32>
    %16 = arith.mulf %12, %15 : vector<2x8x32xf32>
    %cst_12 = arith.constant dense<0.000000e+00> : vector<2x8xf32>
    %17 = vector.multi_reduction <add>, %16, %cst_12 [2] : vector<2x8x32xf32> to vector<2x8xf32>
    %18 = vector.shape_cast %17 : vector<2x8xf32> to vector<2x8x1xf32>
    %cst_13 = arith.constant dense<0xFF800000> : vector<2x1xf32>
    %19 = vector.multi_reduction <maximumf>, %18, %cst_13 [1] : vector<2x8x1xf32> to vector<2x1xf32>
    %20 = vector.shape_cast %19 : vector<2x1xf32> to vector<2x1x1xf32>
    %21 = vector.broadcast %20 : vector<2x1x1xf32> to vector<2x8x1xf32>
    %22 = arith.subf %18, %21 : vector<2x8x1xf32>
    %23 = math.exp %22 : vector<2x8x1xf32>
    %cst_14 = arith.constant dense<0.000000e+00> : vector<2x1xf32>
    %24 = vector.multi_reduction <add>, %23, %cst_14 [1] : vector<2x8x1xf32> to vector<2x1xf32>
    %25 = vector.shape_cast %24 : vector<2x1xf32> to vector<2x1x1xf32>
    %26 = tpu.reciprocal %25 {approx = true} : vector<2x1x1xf32> -> vector<2x1x1xf32>
    %27 = vector.broadcast %26 : vector<2x1x1xf32> to vector<2x8x1xf32>
    %28 = arith.mulf %23, %27 : vector<2x8x1xf32>
    %c0_15 = arith.constant 0 : index
    %c0_16 = arith.constant 0 : index
    %c0_17 = arith.constant 0 : index
    %29 = vector.load %arg3[%c0_15, %c0_16, %c0_17] : memref<2x8x32xf32, #tpu.memory_space<vmem>>, vector<2x8x32xf32>
    %30 = vector.broadcast %28 : vector<2x8x1xf32> to vector<2x8x32xf32>
    %31 = arith.mulf %30, %29 : vector<2x8x32xf32>
    %cst_18 = arith.constant dense<0.000000e+00> : vector<2x32xf32>
    %32 = vector.multi_reduction <add>, %31, %cst_18 [1] : vector<2x8x32xf32> to vector<2x32xf32>
    %c0_19 = arith.constant 0 : index
    %c0_20 = arith.constant 0 : index
    %33 = vector.load %arg8[%c0_19, %c0_20] : memref<2x32xf32, #tpu.memory_space<vmem>>, vector<2x32xf32>
    tpu.vector_store %arg8[%c0_19, %c0_20], %32 {strides = array<i32>} : memref<2x32xf32, #tpu.memory_space<vmem>>, vector<2x32xf32>,
    %c0_21 = arith.constant 0 : index
    %c0_22 = arith.constant 0 : index
    %c0_23 = arith.constant 0 : index
    %34 = vector.load %arg9[%c0_21, %c0_22, %c0_23] : memref<2x8x1xf32, #tpu.memory_space<vmem>>, vector<2x8x1xf32>
    tpu.vector_store %arg9[%c0_21, %c0_22, %c0_23], %28 {strides = array<i32>} : memref<2x8x1xf32, #tpu.memory_space<vmem>>, vector<2x8x1xf32>,
    return
  }
  func.func @transform_0(%arg0: i32) -> (i32, i32) {
    %c0_i32 = arith.constant 0 : i32
    %c0_i32_0 = arith.constant 0 : i32
    return %arg0, %c0_i32 : i32, i32
  }
  func.func @transform_1(%arg0: i32) -> (i32, i32) {
    %c0_i32 = arith.constant 0 : i32
    %c0_i32_0 = arith.constant 0 : i32
    return %arg0, %c0_i32 : i32, i32
  }
  func.func @transform_2(%arg0: i32) -> (i32, i32, i32) {
    %c0_i32 = arith.constant 0 : i32
    %c0_i32_0 = arith.constant 0 : i32
    %c0_i32_1 = arith.constant 0 : i32
    return %arg0, %c0_i32, %c0_i32_0 : i32, i32, i32
  }
  func.func @transform_3(%arg0: i32) -> (i32, i32) {
    %c0_i32 = arith.constant 0 : i32
    %c0_i32_0 = arith.constant 0 : i32
    %c0_i32_1 = arith.constant 0 : i32
    return %c0_i32, %c0_i32_0 : i32, i32
  }
  func.func @transform_4(%arg0: i32) -> (i32, i32) {
    %c0_i32 = arith.constant 0 : i32
    %c0_i32_0 = arith.constant 0 : i32
    %c0_i32_1 = arith.constant 0 : i32
    return %c0_i32, %c0_i32_0 : i32, i32
  }
  func.func @transform_5(%arg0: i32) -> (i32, i32) {
    %c0_i32 = arith.constant 0 : i32
    %c0_i32_0 = arith.constant 0 : i32
    %c0_i32_1 = arith.constant 0 : i32
    return %c0_i32, %c0_i32_0 : i32, i32
  }
  func.func @transform_6(%arg0: i32) -> (i32, i32) {
    %c0_i32 = arith.constant 0 : i32
    %c0_i32_0 = arith.constant 0 : i32
    %c0_i32_1 = arith.constant 0 : i32
    return %c0_i32, %c0_i32_0 : i32, i32
  }
  func.func @transform_7(%arg0: i32) -> (i32, i32) {
    %c0_i32 = arith.constant 0 : i32
    %c0_i32_0 = arith.constant 0 : i32
    return %arg0, %c0_i32 : i32, i32
  }
  func.func @transform_8(%arg0: i32) -> (i32, i32, i32) {
    %c0_i32 = arith.constant 0 : i32
    %c0_i32_0 = arith.constant 0 : i32
    %c0_i32_1 = arith.constant 0 : i32
    return %arg0, %c0_i32, %c0_i32_0 : i32, i32, i32
  }
}

</mosaic_0001>

<llo_original>
// kernel: additive_attention.1
$region0: #{additive_attention.1}
  #allocation0 [shape = 'u32[]', space=smem, size = 0x4, offset = 0x4, fixed_abs, tag = 'smem constant byte address 0x4 - core index']
  #allocation1 [shape = 'u32[144,128]{1,0:T(1,128)}', space=vmem, size = 0x12000, scoped, tag = 'internal scratch']
  %s0 = inlined_call_operand.vmem [shape: f32[16,32], index: 0, kind: input, shape index: {}]
  %s1 = inlined_call_operand.vmem [shape: f32[16,32], index: 1, kind: input, shape index: {}]
  %s2 = inlined_call_operand.vmem [shape: f32[2,8,32], index: 2, kind: input, shape index: {}]
  %s3 = inlined_call_operand.vmem [shape: f32[32,32], index: 3, kind: input, shape index: {}]
  %s4 = inlined_call_operand.vmem [shape: f32[32,32], index: 4, kind: input, shape index: {}]
  %s5 = inlined_call_operand.vmem [shape: f32[1,32], index: 5, kind: input, shape index: {}]
  %s6 = inlined_call_operand.vmem [shape: f32[1,32], index: 6, kind: input, shape index: {}]
  %s7 = inlined_call_operand.hbm [shape: f32[2,32], index: 7, kind: output, shape index: {0}]
  %s8 = inlined_call_operand.vmem [shape: f32[2,8,1], index: 8, kind: output, shape index: {1}]
  %9 = xla_tuple %s7, %s8
  %s10 = sld [smem:[#allocation0]]
  $region46: #{additive_attention.1} parent=0
    _
  %s12 = ssub.s32 1, %s10
  %s13 = scalar_select 0, %s12, %s10
  $region1: #{additive_attention.1} parent=0
    #allocation2 [shape = 'u8[1024]{0}', space=vmem, size = 0x400, scoped, tag = 'output window, operand 0, single buffered']
    #allocation3 [shape = 's32[1]{0}', space=sflag, size = 0x4, scoped, tag = 'scoped memory for additive_attention.1']
    %14 = vsyncpa [#allocation3], 0
    // Predicated region
    $region2: #{additive_attention.1} parent=1 // pred_check
      _
    $region3: #{additive_attention.1} parent=1 // pred_check_branch
      %16 = sbr.rel (0) target = $region5
    $region4: #{additive_attention.1} parent=1 // pred_region
      _
    $region5: #{additive_attention.1} parent=1 // pred_fallthru
      _
    // Predicated region
    $region6: #{additive_attention.1} parent=1 // pred_check
      _
    $region7: #{additive_attention.1} parent=1 // pred_check_branch
      %18 = sbr.rel (0) target = $region9
    $region8: #{additive_attention.1} parent=1 // pred_region
      _
    $region9: #{additive_attention.1} parent=1 // pred_fallthru
      _
    // Predicated region
    $region10: #{additive_attention.1} parent=1 // pred_check
      _
    $region11: #{additive_attention.1} parent=1 // pred_check_branch
      %20 = sbr.rel (0) target = $region13
    $region12: #{additive_attention.1} parent=1 // pred_region
      _
    $region13: #{additive_attention.1} parent=1 // pred_fallthru
      _
    // Predicated region
    $region14: #{additive_attention.1} parent=1 // pred_check
      _
    $region15: #{additive_attention.1} parent=1 // pred_check_branch
      %22 = sbr.rel (0) target = $region17
    $region16: #{additive_attention.1} parent=1 // pred_region
      _
    $region17: #{additive_attention.1} parent=1 // pred_fallthru
      _
    // Predicated region
    $region18: #{additive_attention.1} parent=1 // pred_check
      _
    $region19: #{additive_attention.1} parent=1 // pred_check_branch
      %24 = sbr.rel (0) target = $region21
    $region20: #{additive_attention.1} parent=1 // pred_region
      _
    $region21: #{additive_attention.1} parent=1 // pred_fallthru
      _
    // Predicated region
    $region22: #{additive_attention.1} parent=1 // pred_check
      _
    $region23: #{additive_attention.1} parent=1 // pred_check_branch
      %26 = sbr.rel (0) target = $region25
    $region24: #{additive_attention.1} parent=1 // pred_region
      _
    $region25: #{additive_attention.1} parent=1 // pred_fallthru
      _
    // Predicated region
    $region26: #{additive_attention.1} parent=1 // pred_check
      _
    $region27: #{additive_attention.1} parent=1 // pred_check_branch
      %28 = sbr.rel (0) target = $region29
    $region28: #{additive_attention.1} parent=1 // pred_region
      _
    $region29: #{additive_attention.1} parent=1 // pred_fallthru
      _
    %v29 = vld [vmem:[%s1] sm:$0xff]
    %v30 = vld [vmem:[%s1 + $0x8] sm:$0xff]
    %v31 = vld [vmem:[%s4] sm:$0xff]
    %v32 = vld [vmem:[%s4 + $0x8] sm:$0xff]
    %v33 = vld [vmem:[%s4 + $0x10] sm:$0xff]
    %v34 = vld [vmem:[%s4 + $0x18] sm:$0xff]
    %v35 = vld [vmem:[%s0] sm:$0xff]
    %v36 = vld [vmem:[%s0 + $0x8] sm:$0xff]
    %v37 = vld [vmem:[%s3] sm:$0xff]
    %v38 = vld [vmem:[%s3 + $0x8] sm:$0xff]
    %v39 = vld [vmem:[%s3 + $0x10] sm:$0xff]
    %v40 = vld [vmem:[%s3 + $0x18] sm:$0xff]
    %vm41 = vcmask 261120
    %v43 = vsel %vm41, %v35, 0
    %v46 = vsel %vm41, %v36, 0
    %48 = vmatprep.subr.mxu0 0.0
    %49 = vmatpush1.msra.mxu0 %v37
    %50 = vmatprep.subr.mxu0 0.0
    %51 = vmatpush1.msra.mxu0 %v38
    %52 = vmatprep.subr.mxu0 0.0
    %53 = vmatpush1.msra.mxu0 %v39
    %54 = vmatprep.subr.mxu0 0.0
    %55 = vmatpush1.msra.mxu0 %v40
    %56 = vmatprep.subr.mxu0 0.0
    %57 = vmatpush1.msra.mxu0 0.0
    %58 = vmatprep.subr.mxu0 0.0
    %59 = vmatpush1.msra.mxu0 0.0
    %60 = vmatprep.subr.mxu0 0.0
    %61 = vmatpush1.msra.mxu0 0.0
    %62 = vmatprep.subr.mxu0 0.0
    %63 = vmatpush1.msra.mxu0 0.0
    %64 = vmatprep.subr.mxu0 0.0
    %65 = vmatpush1.msra.mxu0 0.0
    %66 = vmatprep.subr.mxu0 0.0
    %67 = vmatpush1.msra.mxu0 0.0
    %68 = vmatprep.subr.mxu0 0.0
    %69 = vmatpush1.msra.mxu0 0.0
    %70 = vmatprep.subr.mxu0 0.0
    %71 = vmatpush1.msra.mxu0 0.0
    %72 = vmatprep.subr.mxu0 0.0
    %73 = vmatpush1.msra.mxu0 0.0
    %74 = vmatprep.subr.mxu0 0.0
    %75 = vmatpush1.msra.mxu0 0.0
    %76 = vmatprep.subr.mxu0 0.0
    %77 = vmatpush1.msra.mxu0 0.0
    %78 = vmatprep.subr.mxu0 0.0
    %79 = vmatpush1.msra.mxu0 0.0
    %80 = vmatprep.subr.mxu0 0.0
    %81 = vmatpush1.msra.mxu0 0.0
    %82 = vmatprep.subr.mxu0 0.0
    %83 = vmatpush1.msra.mxu0 0.0
    %84 = vmatprep.subr.mxu0 0.0
    %85 = vmatpush1.msra.mxu0 0.0
    %86 = vmatprep.subr.mxu0 0.0
    %87 = vmatpush1.msra.mxu0 0.0
    %88 = vmatprep.subr.mxu0 0.0
    %89 = vmatpush1.msra.mxu0 0.0
    %90 = vmatprep.subr.mxu0 0.0
    %91 = vmatpush1.msra.mxu0 0.0
    %92 = vmatprep.subr.mxu0 0.0
    %93 = vmatpush1.msra.mxu0 0.0
    %94 = vmatprep.subr.mxu0 0.0
    %95 = vmatpush1.msra.mxu0 0.0
    %96 = vmatprep.subr.mxu0 0.0
    %97 = vmatpush1.msra.mxu0 0.0
    %98 = vmatprep.subr.mxu0 0.0
    %99 = vmatpush1.msra.mxu0 0.0
    %100 = vmatprep.subr.mxu0 0.0
    %101 = vmatpush1.msra.mxu0 0.0
    %102 = vmatprep.subr.mxu0 0.0
    %103 = vmatpush1.msra.mxu0 0.0
    %104 = vmatprep.subr.mxu0 0.0
    %105 = vmatpush1.msra.mxu0 0.0
    %106 = vmatprep.subr.mxu0 0.0
    %107 = vmatpush1.msra.mxu0 0.0
    %108 = vmatprep.subr.mxu0 0.0
    %109 = vmatpush1.msra.mxu0 0.0
    %110 = vmatprep.subr.mxu0 0.0
    %111 = vmatpush1.msra.mxu0 0.0
    %112 = vmatprep.mubr.f32.mxu0 0.0
    %113 = vmatmul.mubr.f32.gmra.mrb[0].mxu0 %v43
    %v114 = vpop.f32.mrb[0].mxu0
    %v115 = vadd.f32 0.0, %v114
    %v116 = vpop.f32.mrb[0].mxu0
    %117 = vmatprep.mubr.f32.mxu0 0.0
    %118 = vmatmul.mubr.f32.gmra.mrb[0].mxu0 %v46
    %v119 = vpop.f32.mrb[0].mxu0
    %v120 = vadd.f32 0.0, %v119
    %v121 = vpop.f32.mrb[0].mxu0
    %122 = vdwg.mxu0
    %v124 = vsel %vm41, %v29, 0
    %v127 = vsel %vm41, %v30, 0
    %129 = vmatprep.subr.mxu0 0.0
    %130 = vmatpush1.msra.mxu0 %v31
    %131 = vmatprep.subr.mxu0 0.0
    %132 = vmatpush1.msra.mxu0 %v32
    %133 = vmatprep.subr.mxu0 0.0
    %134 = vmatpush1.msra.mxu0 %v33
    %135 = vmatprep.subr.mxu0 0.0
    %136 = vmatpush1.msra.mxu0 %v34
    %137 = vmatprep.subr.mxu0 0.0
    %138 = vmatpush1.msra.mxu0 0.0
    %139 = vmatprep.subr.mxu0 0.0
    %140 = vmatpush1.msra.mxu0 0.0
    %141 = vmatprep.subr.mxu0 0.0
    %142 = vmatpush1.msra.mxu0 0.0
    %143 = vmatprep.subr.mxu0 0.0
    %144 = vmatpush1.msra.mxu0 0.0
    %145 = vmatprep.subr.mxu0 0.0
    %146 = vmatpush1.msra.mxu0 0.0
    %147 = vmatprep.subr.mxu0 0.0
    %148 = vmatpush1.msra.mxu0 0.0
    %149 = vmatprep.subr.mxu0 0.0
    %150 = vmatpush1.msra.mxu0 0.0
    %151 = vmatprep.subr.mxu0 0.0
    %152 = vmatpush1.msra.mxu0 0.0
    %153 = vmatprep.subr.mxu0 0.0
    %154 = vmatpush1.msra.mxu0 0.0
    %155 = vmatprep.subr.mxu0 0.0
    %156 = vmatpush1.msra.mxu0 0.0
    %157 = vmatprep.subr.mxu0 0.0
    %158 = vmatpush1.msra.mxu0 0.0
    %159 = vmatprep.subr.mxu0 0.0
    %160 = vmatpush1.msra.mxu0 0.0
    %161 = vmatprep.subr.mxu0 0.0
    %162 = vmatpush1.msra.mxu0 0.0
    %163 = vmatprep.subr.mxu0 0.0
    %164 = vmatpush1.msra.mxu0 0.0
    %165 = vmatprep.subr.mxu0 0.0
    %166 = vmatpush1.msra.mxu0 0.0
    %167 = vmatprep.subr.mxu0 0.0
    %168 = vmatpush1.msra.mxu0 0.0
    %169 = vmatprep.subr.mxu0 0.0
    %170 = vmatpush1.msra.mxu0 0.0
    %171 = vmatprep.subr.mxu0 0.0
    %172 = vmatpush1.msra.mxu0 0.0
    %173 = vmatprep.subr.mxu0 0.0
    %174 = vmatpush1.msra.mxu0 0.0
    %175 = vmatprep.subr.mxu0 0.0
    %176 = vmatpush1.msra.mxu0 0.0
    %177 = vmatprep.subr.mxu0 0.0
    %178 = vmatpush1.msra.mxu0 0.0
    %179 = vmatprep.subr.mxu0 0.0
    %180 = vmatpush1.msra.mxu0 0.0
    %181 = vmatprep.subr.mxu0 0.0
    %182 = vmatpush1.msra.mxu0 0.0
    %183 = vmatprep.subr.mxu0 0.0
    %184 = vmatpush1.msra.mxu0 0.0
    %185 = vmatprep.subr.mxu0 0.0
    %186 = vmatpush1.msra.mxu0 0.0
    %187 = vmatprep.subr.mxu0 0.0
    %188 = vmatpush1.msra.mxu0 0.0
    %189 = vmatprep.subr.mxu0 0.0
    %190 = vmatpush1.msra.mxu0 0.0
    %191 = vmatprep.subr.mxu0 0.0
    %192 = vmatpush1.msra.mxu0 0.0
    %193 = vmatprep.mubr.f32.mxu0 0.0
    %194 = vmatmul.mubr.f32.gmra.mrb[0].mxu0 %v124
    %v195 = vpop.f32.mrb[0].mxu0
    %v196 = vadd.f32 %v115, %v195
    %v197 = vpop.f32.mrb[0].mxu0
    %198 = vmatprep.mubr.f32.mxu0 0.0
    %199 = vmatmul.mubr.f32.gmra.mrb[0].mxu0 %v127
    %v200 = vpop.f32.mrb[0].mxu0
    %v201 = vadd.f32 %v120, %v200
    %v202 = vpop.f32.mrb[0].mxu0
    %203 = vdwg.mxu0
    %v204 = vld [vmem:[%s5] sm:$0x1]
    %v206 = vlaneseq
    %v207 = vshrl.u32 %v206, 7
    %v208 = vsub.s32 0, %v207
    %v209 = vrot.slane %v204, %v208
    %v211 = vadd.f32 %v196, %v209
    %v212 = vadd.f32 %v201, %v209
    %v213 = vtanh.pop %v211
    %v214 = vtanh.pop %v212
    %v215 = vld [vmem:[%s6] sm:$0x1]
    %v217 = vlaneseq
    %v218 = vshrl.u32 %v217, 7
    %v219 = vsub.s32 0, %v218
    %v220 = vrot.slane %v215, %v219
    %v222 = vmul.f32 %v213, %v220
    %v223 = vmul.f32 %v214, %v220
    %v224 = vsel %vm41, %v222, 0.0
    %225 = vadd.xlane.f32.xlu0 %v224
    %v226 = vpop.xlane.xlu0 %225
    %v227 = vsel %vm41, %v223, 0.0
    %228 = vadd.xlane.f32.xlu0 %v227
    %v229 = vpop.xlane.xlu0 %228
    %v230 = vrot.slane %v226, 4
    %v231 = vmax.f32 %v226, %v230
    %v232 = vrot.slane %v231, 2
    %v233 = vmax.f32 %v231, %v232
    %v234 = vrot.slane %v233, 1
    %v235 = vmax.f32 %v233, %v234
    %v236 = vrot.slane %v229, 4
    %v237 = vmax.f32 %v229, %v236
    %v238 = vrot.slane %v237, 2
    %v239 = vmax.f32 %v237, %v238
    %v240 = vrot.slane %v239, 1
    %v241 = vmax.f32 %v239, %v240
    %v242 = vsub.f32 %v226, %v235
    %v243 = vsub.f32 %v229, %v241
    %v244 = vmul.f32 %v242, 1.442695
    %v245 = vpow.pop %v244
    %v246 = vmul.f32 %v243, 1.442695
    %v247 = vpow.pop %v246
    %v248 = vrot.slane %v245, 4
    %v249 = vadd.f32 %v245, %v248
    %v250 = vrot.slane %v249, 2
    %v251 = vadd.f32 %v249, %v250
    %v252 = vrot.slane %v251, 1
    %v253 = vadd.f32 %v251, %v252
    %v254 = vrot.slane %v247, 4
    %v255 = vadd.f32 %v247, %v254
    %v256 = vrot.slane %v255, 2
    %v257 = vadd.f32 %v255, %v256
    %v258 = vrot.slane %v257, 1
    %v259 = vadd.f32 %v257, %v258
    %v260 = vrcp.pop %v253
    %v261 = vrcp.pop %v259
    %v262 = vmul.f32 %v245, %v260
    %v263 = vmul.f32 %v247, %v261
    %v264 = vld [vmem:[%s2] sm:$0xff]
    %v265 = vld [vmem:[%s2 + $0x8] sm:$0xff]
    %v266 = vmul.f32 %v262, %v264
    %v267 = vmul.f32 %v263, %v265
    %v268 = vsel %vm41, %v266, 0.0
    %v269 = vrot.slane %v268, 4
    %v270 = vadd.f32 %v268, %v269
    %v271 = vrot.slane %v270, 2
    %v272 = vadd.f32 %v270, %v271
    %v273 = vrot.slane %v272, 1
    %v274 = vadd.f32 %v272, %v273
    %v275 = vsel %vm41, %v267, 0.0
    %v276 = vrot.slane %v275, 4
    %v277 = vadd.f32 %v275, %v276
    %v278 = vrot.slane %v277, 2
    %v279 = vadd.f32 %v277, %v278
    %v280 = vrot.slane %v279, 1
    %v281 = vadd.f32 %v279, %v280
    %vm284 = vcmask 1041409
    %v285 = vsel %vm284, %v281, %v274
    %vm287 = vcmask 254976
    %288 = vst.msk [vmem:[#allocation2] sm:$0x3] %vm287, %v285
    %vm289 = vcmask 7168
    %290 = vst.msk [vmem:[%s8] sm:$0xff] %vm289, %v262
    %291 = vst.msk [vmem:[%s8 + $0x8] sm:$0xff] %vm289, %v263
    // Predicated region
    $region30: #{additive_attention.1} parent=1 // pred_check
      _
    $region31: #{additive_attention.1} parent=1 // pred_check_branch
      %293 = sbr.rel (0) target = $region33
    $region32: #{additive_attention.1} parent=1 // pred_region
      %s295 = ssub.s32 32, 32
      %296 = vsyncadd [#allocation3], %s295
      %s298 = sshll.u32 [#allocation2], 4
      %s299 = int_to_ptr.vmem [resolvable:$true] %s298
      %301 = dma.vmem_to_hbm [thread:$0]  %s299, 32, %s7, [#allocation3]
    $region33: #{additive_attention.1} parent=1 // pred_fallthru
      _
    // Predicated region
    $region34: #{additive_attention.1} parent=1 // pred_check
      _
    $region35: #{additive_attention.1} parent=1 // pred_check_branch
      %303 = sbr.rel (0) target = $region37
    $region36: #{additive_attention.1} parent=1 // pred_region
      _
    $region37: #{additive_attention.1} parent=1 // pred_fallthru
      _
    // Predicated region
    $region38: #{additive_attention.1} parent=1 // pred_check
      _
    $region39: #{additive_attention.1} parent=1 // pred_check_branch
      %305 = sbr.rel (0) target = $region41
    $region40: #{additive_attention.1} parent=1 // pred_region
      %306 = dma.done [#allocation3], 32
    $region41: #{additive_attention.1} parent=1 // pred_fallthru
      _
    // Predicated region
    $region42: #{additive_attention.1} parent=1 // pred_check
      _
    $region43: #{additive_attention.1} parent=1 // pred_check_branch
      %308 = sbr.rel (0) target = $region45
    $region44: #{additive_attention.1} parent=1 // pred_region
      _
    $region45: #{additive_attention.1} parent=1 // pred_fallthru
      _
    %309 = vsyncpa [#allocation3], 1

</llo_original>
